<compile_context>
chip_gen: v7x
topology: tpu7x:2x2x1
jax: 0.10.0
libtpu: 0.0.40
codegen_flags: <defaults>
</compile_context>

<pallas_src>
import functools

import jax
import jax.numpy as jnp
from jax.experimental import pallas as pl
from jax.experimental.pallas import tpu as pltpu


def _clamp_kernel(x_ref, o_ref, *, min_val, max_val):
    # Elementwise clamp: lowers to vmax + vmin on the VPU, fully hidden under DMA.
    o_ref[...] = jnp.clip(x_ref[...], min_val, max_val).astype(o_ref.dtype)


def _sublane_multiple(dtype):
    # f32 -> 8 sublanes per vreg, bf16 -> 16, int8/fp8 -> 32.
    itemsize = jnp.dtype(dtype).itemsize
    return max(8, 8 * (4 // max(1, itemsize)))


def clamp_pallas(x, min_val, max_val, *, target_block_bytes=4 * 1024 * 1024):
    """Clamp every element of x to [min_val, max_val] using a Pallas TPU kernel."""
    orig_shape = x.shape
    dtype = x.dtype
    itemsize = jnp.dtype(dtype).itemsize

    flat = x.reshape(-1)                      # free bitcast for contiguous inputs
    n = flat.shape[0]
    if n == 0:
        return x

    # Wide lane-dense column width that divides n exactly (no padding);
    # only ragged sizes fall back to 128 lanes with a minimal zero-pad.
    cols = None
    for cand in (4096, 2048, 1024, 512, 256, 128):
        if n % cand == 0:
            cols = cand
            break
    pad = 0
    if cols is None:
        cols = 128
        pad = pl.cdiv(n, cols) * cols - n
        flat = jnp.pad(flat, (0, pad))
    rows = flat.shape[0] // cols
    x2d = flat.reshape(rows, cols)

    sub = _sublane_multiple(dtype)
    if rows <= sub:
        # Full-extent block in the sublane dim (allowed even if not 8-aligned).
        tile_r = rows
    else:
        # ~target_block_bytes per block; in+out double-buffered = 4 copies,
        # comfortably inside v5e (16 MiB scoped), v6e (32 MiB), v7x (32/64 MiB).
        target_rows = max(sub, (target_block_bytes // (cols * itemsize)) // sub * sub)
        # Keep at least 2 grid steps so the single parallel axis shards
        # across both TensorCores on v7x.
        half = ((pl.cdiv(rows, 2) + sub - 1) // sub) * sub
        tile_r = max(sub, min(target_rows, half))
    grid = (pl.cdiv(rows, tile_r),)           # ragged last block is masked by Pallas

    kernel = functools.partial(
        _clamp_kernel, min_val=float(min_val), max_val=float(max_val)
    )

    out2d = pl.pallas_call(
        kernel,
        out_shape=jax.ShapeDtypeStruct((rows, cols), dtype),
        grid_spec=pltpu.PrefetchScalarGridSpec(
            num_scalar_prefetch=0,
            grid=grid,
            in_specs=[pl.BlockSpec((tile_r, cols), lambda i: (i, 0))],
            out_specs=pl.BlockSpec((tile_r, cols), lambda i: (i, 0)),
        ),
        compiler_params=pltpu.CompilerParams(
            dimension_semantics=("parallel",),
            vmem_limit_bytes=32 * 1024 * 1024,
        ),
    )(x2d)

    out = out2d.reshape(-1)
    if pad:
        out = out[:n]
    return out.reshape(orig_shape)


class Clamp:
    """JAX/Pallas equivalent of the PyTorch Clamp module."""

    def __init__(self, min_val, max_val):
        self.min_val = min_val
        self.max_val = max_val

    def __call__(self, x):
        return clamp_pallas(x, self.min_val, self.max_val)


if __name__ == "__main__":
    key = jax.random.PRNGKey(0)

    # Small NCHW-like input, consistent with how the module is used on feature maps.
    x = jax.random.normal(key, (2, 4, 16, 16), dtype=jnp.float32) * 3.0
    module = Clamp(min_val=-1.0, max_val=1.0)
    y = jax.block_until_ready(module(x))

    y_ref = jnp.clip(x, -1.0, 1.0)
    assert y.shape == x.shape and y.dtype == x.dtype
    assert jnp.allclose(y, y_ref), "mismatch vs reference clamp"

    # Ragged-size sanity check (exercises the fallback pad path).
    x2 = jax.random.normal(jax.random.PRNGKey(1), (3, 5, 7), dtype=jnp.float32) * 2.0
    y2 = jax.block_until_ready(clamp_pallas(x2, -0.5, 0.5))
    assert jnp.allclose(y2, jnp.clip(x2, -0.5, 0.5)), "mismatch on ragged shape"

    print("KERNEL_OK")
</pallas_src>

<mosaic_0001>
module attributes {stable_mosaic.version = 11 : i64} {
  func.func @_clamp_kernel(%arg0: i32, %arg1: memref<1x2048xf32, #tpu.memory_space<vmem>>, %arg2: memref<1x2048xf32, #tpu.memory_space<vmem>>) attributes {dimension_semantics = [#tpu.dimension_semantics<parallel>], iteration_bounds = array<i64: 1>, scalar_prefetch = 0 : i64, scratch_operands = 0 : i64, tpu.core_type = #tpu.core_type<tc>, window_params = [{transform_indices = @transform_0, window_bounds = array<i64: 1, 2048>}, {transform_indices = @transform_1, window_bounds = array<i64: 1, 2048>}]} {
    %c0 = arith.constant 0 : index
    %c0_0 = arith.constant 0 : index
    %0 = vector.load %arg1[%c0, %c0_0] : memref<1x2048xf32, #tpu.memory_space<vmem>>, vector<1x2048xf32>
    %cst = arith.constant -1.000000e+00 : f32
    %cst_1 = arith.constant 1.000000e+00 : f32
    %1 = vector.broadcast %cst : f32 to vector<1x2048xf32>
    %2 = arith.maximumf %1, %0 : vector<1x2048xf32>
    %3 = vector.broadcast %cst_1 : f32 to vector<1x2048xf32>
    %4 = arith.minimumf %3, %2 : vector<1x2048xf32>
    %c0_2 = arith.constant 0 : index
    %c0_3 = arith.constant 0 : index
    %5 = vector.load %arg2[%c0_2, %c0_3] : memref<1x2048xf32, #tpu.memory_space<vmem>>, vector<1x2048xf32>
    tpu.vector_store %arg2[%c0_2, %c0_3], %4 {strides = array<i32>} : memref<1x2048xf32, #tpu.memory_space<vmem>>, vector<1x2048xf32>,
    return
  }
  func.func @transform_0(%arg0: i32) -> (i32, i32) {
    %c0_i32 = arith.constant 0 : i32
    %c0_i32_0 = arith.constant 0 : i32
    return %arg0, %c0_i32 : i32, i32
  }
  func.func @transform_1(%arg0: i32) -> (i32, i32) {
    %c0_i32 = arith.constant 0 : i32
    %c0_i32_0 = arith.constant 0 : i32
    return %arg0, %c0_i32 : i32, i32
  }
}

</mosaic_0001>

<llo_original>
// kernel: tpu_custom_call.1
$region0: #{tpu_custom_call.1}
  #allocation0 [shape = 'u32[]', space=smem, size = 0x4, offset = 0x4, fixed_abs, tag = 'smem constant byte address 0x4 - core index']
  #allocation1 [shape = 'u32[144,128]{1,0:T(1,128)}', space=vmem, size = 0x12000, scoped, tag = 'internal scratch']
  %s0 = inlined_call_operand.hbm [shape: f32[1,2048], index: 0, kind: input, shape index: {}]
  %s1 = inlined_call_operand.hbm [shape: f32[1,2048], index: 1, kind: output, shape index: {}]
  %s2 = sld [smem:[#allocation0]]
  $region18: #{tpu_custom_call.1} parent=0
    _
  %s4 = ssub.s32 1, %s2
  %s5 = scalar_select 0, %s4, %s2
  $region1: #{tpu_custom_call.1} parent=0
    #allocation2 [shape = 'u8[8192]{0}', space=vmem, size = 0x2000, scoped, tag = 'input window, operand 0, single buffered']
    #allocation3 [shape = 's32[1]{0}', space=sflag, size = 0x4, scoped, tag = 'scoped memory for tpu_custom_call.1']
    #allocation4 [shape = 's32[1]{0}', space=sflag, size = 0x4, scoped, tag = 'scoped memory for tpu_custom_call.1']
    #allocation5 [shape = 'u8[8192]{0}', space=vmem, size = 0x2000, scoped, tag = 'output window, operand 0, single buffered']
    %6 = vsyncpa [#allocation3], 0
    %7 = vsyncpa [#allocation4], 0
    // Predicated region
    $region2: #{tpu_custom_call.1} parent=1 // pred_check
      _
    $region3: #{tpu_custom_call.1} parent=1 // pred_check_branch
      %9 = sbr.rel (0) target = $region5
    $region4: #{tpu_custom_call.1} parent=1 // pred_region
      %s11 = ssub.s32 256, 256
      %12 = vsyncadd [#allocation3], %s11
      %s14 = sshll.u32 [#allocation2], 4
      %s15 = int_to_ptr.vmem [resolvable:$true] %s14
      %17 = dma.hbm_to_vmem [thread:$0]  %s0, 256, %s15, [#allocation3]
    $region5: #{tpu_custom_call.1} parent=1 // pred_fallthru
      _
    // Predicated region
    $region6: #{tpu_custom_call.1} parent=1 // pred_check
      _
    $region7: #{tpu_custom_call.1} parent=1 // pred_check_branch
      %19 = sbr.rel (0) target = $region9
    $region8: #{tpu_custom_call.1} parent=1 // pred_region
      %20 = dma.done [#allocation3], 256
    $region9: #{tpu_custom_call.1} parent=1 // pred_fallthru
      _
    %v21 = vld [vmem:[#allocation2] sm:$0xff]
    %v22 = vld [vmem:[#allocation2 + $0x8] sm:$0xff]
    %v23 = vmax.f32 %v21, -1.0
    %v24 = vmax.f32 %v22, -1.0
    %v25 = vmin.f32 %v23, 1.0
    %v26 = vmin.f32 %v24, 1.0
    %27 = vst [vmem:[#allocation5] sm:$0xff] %v25
    %28 = vst [vmem:[#allocation5 + $0x8] sm:$0xff] %v26
    // Predicated region
    $region10: #{tpu_custom_call.1} parent=1 // pred_check
      _
    $region11: #{tpu_custom_call.1} parent=1 // pred_check_branch
      %30 = sbr.rel (0) target = $region13
    $region12: #{tpu_custom_call.1} parent=1 // pred_region
      %s32 = ssub.s32 256, 256
      %33 = vsyncadd [#allocation4], %s32
      %s35 = sshll.u32 [#allocation5], 4
      %s36 = int_to_ptr.vmem [resolvable:$true] %s35
      %38 = dma.vmem_to_hbm [thread:$0]  %s36, 256, %s1, [#allocation4]
    $region13: #{tpu_custom_call.1} parent=1 // pred_fallthru
      _
    // Predicated region
    $region14: #{tpu_custom_call.1} parent=1 // pred_check
      _
    $region15: #{tpu_custom_call.1} parent=1 // pred_check_branch
      %40 = sbr.rel (0) target = $region17
    $region16: #{tpu_custom_call.1} parent=1 // pred_region
      %41 = dma.done [#allocation4], 256
    $region17: #{tpu_custom_call.1} parent=1 // pred_fallthru
      _
    %42 = vsyncpa [#allocation3], 1
    %43 = vsyncpa [#allocation4], 1

</llo_original>
